<compile_context>
chip_gen: v7x
topology: tpu7x:2x2x1
jax: 0.10.0
libtpu: 0.0.40
codegen_flags: <defaults>
</compile_context>

<pallas_src>
import functools

import numpy as np
import jax
import jax.numpy as jnp
from jax import lax
from jax.experimental import pallas as pl
from jax.experimental.pallas import tpu as pltpu

IMG = 28  # spatial size fixed by the module: x.view(-1, 1, 28, 28)


# -----------------------------------------------------------------------------
# Static geometry of the zero-bordered, flattened image plane
# -----------------------------------------------------------------------------
def _geometry(k1, k2, pool1, k3, k4, pool2):
    assert all(k % 2 == 1 for k in (k1, k2, k3, k4)), \
        "odd kernel sizes required ('same' padding like the PyTorch module)"
    assert IMG % pool1 == 0 and (IMG // pool1) % pool2 == 0, \
        "pool sizes must divide 28 (floor-mode pooling not modelled)"
    s1 = pool1                      # plane stride after pool1
    s2 = pool1 * pool2              # plane stride after pool2
    # Border wide enough that every 'same'-padding tap of every conv / pool
    # issued from a VALID position stays inside the bordered plane.
    B = max(1, k1 // 2, k2 // 2, s1 * (k3 // 2), s1 * (k4 // 2))
    S = IMG + 2 * B                 # bordered plane side (32 for 3x3 / pool 2)
    W = S * S                       # flattened plane size (1024)
    Wp = ((W + 127) // 128) * 128   # per-sample lane stride (lane-tile aligned)
    return B, S, W, Wp, s1, s2


def _grid_mask(B, S, W, Wp, stride):
    """0/1 mask of plane positions holding a real activation at `stride`."""
    r = np.arange(S)
    ok = (r >= B) & (r < B + IMG) & ((r - B) % stride == 0)
    m = np.outer(ok, ok).astype(np.float32).reshape(W)
    return np.pad(m, (0, Wp - W))


# -----------------------------------------------------------------------------
# pltpu.roll sign-convention probe (runs once, outside any jit trace)
# -----------------------------------------------------------------------------
def _roll_probe_kernel(x_ref, o_ref):
    o_ref[...] = pltpu.roll(x_ref[...], shift=1, axis=1)


@functools.lru_cache(maxsize=None)
def _roll_sign():
    """Return s so that pltpu.roll(x, (s*off) % L, axis=-1)[l] == x[(l+off) % L]."""
    x = np.broadcast_to(np.arange(128, dtype=np.int32)[None, :], (8, 128)).copy()
    with jax.ensure_compile_time_eval():
        y = pl.pallas_call(
            _roll_probe_kernel,
            out_shape=jax.ShapeDtypeStruct((8, 128), jnp.int32),
        )(jnp.asarray(x))
        y = np.asarray(jax.device_get(y))
    if np.array_equal(y, np.roll(x, 1, axis=1)):
        return -1                   # jnp.roll convention: out[l] = in[l - shift]
    if np.array_equal(y, np.roll(x, -1, axis=1)):
        return 1                    # opposite convention: out[l] = in[l + shift]
    raise RuntimeError("unexpected pltpu.roll semantics")


# -----------------------------------------------------------------------------
# Fused forward kernel (one group of `bt` samples per grid step)
# -----------------------------------------------------------------------------
def _make_kernel(cfg, bt):
    c1, k1, c2, k2, pool1, c3, k3, c4, k4, pool2, lf = cfg
    B, S, W, Wp, s1, s2 = _geometry(k1, k2, pool1, k3, k4, pool2)
    L = bt * Wp                     # lanes per grid step (bt planes side by side)
    cmax = max(c1, c2, c3, c4)
    sign = _roll_sign()

    def shifted(x, off):
        """x rotated so that out[:, l] == x[:, l + off] (lane-aligned, XLU)."""
        sh = (sign * off) % L
        return x if sh == 0 else pltpu.roll(x, shift=sh, axis=1)

    def conv(slab, w_ref, b_ref, mask, k, st):
        """'same' conv + bias + ReLU on the stride-`st` embedded grid."""
        p = k // 2
        cin = slab.shape[0]
        early = (cin % 8 == 0)      # aligned sublane pieces -> bf16 roll/concat
        src = slab.astype(jnp.bfloat16) if early else slab
        taps = [shifted(src, st * ((dy - p) * S + (dx - p)))
                for dy in range(k) for dx in range(k)]
        patch = jnp.concatenate(taps, axis=0)            # (k*k*cin, L)
        if not early:
            patch = patch.astype(jnp.bfloat16)
        acc = jnp.dot(w_ref[...], patch,
                      preferred_element_type=jnp.float32)  # (cout, L) f32
        acc = jnp.maximum(acc + b_ref[...], 0.0)
        return acc * mask[:acc.shape[0], :]              # zero borders / gaps

    def pool(slab, mask, pp, st):
        """pp x pp max pool of the stride-`st` grid (output at stride st*pp)."""
        best = None
        for a in range(pp):
            for b in range(pp):
                v = shifted(slab, st * (a * S + b))
                best = v if best is None else jnp.maximum(best, v)
        return best * mask[:best.shape[0], :]

    def kernel(x_ref, masks_ref,
               w1, b1, w2, b2, w3, b3, w4, b4, wl1, bl1, wl2, bl2,
               out_ref, buf_a, buf_b, fc_buf):
        # Hoisted (cmax, L) mask broadcasts: built once, reused across layers.
        m1 = jnp.broadcast_to(masks_ref[0], (cmax, L))     # stride 1
        mp1 = jnp.broadcast_to(masks_ref[1], (cmax, L))    # stride pool1
        mp2 = jnp.broadcast_to(masks_ref[2], (cmax, L))    # stride pool1*pool2

        buf_a[0:c1, :] = conv(x_ref[0],       w1, b1, m1, k1, 1)
        buf_b[0:c2, :] = conv(buf_a[0:c1, :], w2, b2, m1, k2, 1)
        buf_a[0:c2, :] = pool(buf_b[0:c2, :], mp1, pool1, 1)
        buf_b[0:c3, :] = conv(buf_a[0:c2, :], w3, b3, mp1, k3, s1)
        buf_a[0:c4, :] = conv(buf_b[0:c3, :], w4, b4, mp1, k4, s1)
        pooled = pool(buf_a[0:c4, :], mp2, pool2, s1)      # (c4, L) f32

        # Move the batch from lanes to sublanes once, for batch-in-M fc dots.
        for b in range(bt):
            fc_buf[:, b, :] = pooled[:, b * Wp:(b + 1) * Wp]

        # linear1 (expanded onto the embedded plane, PyTorch NCHW flatten order)
        h = jnp.zeros((bt, lf), jnp.float32)
        for c in range(c4):
            h = h + jnp.dot(fc_buf[c].astype(jnp.bfloat16), wl1[c],
                            preferred_element_type=jnp.float32)
        h = h + bl1[...]
        # linear2, zero-padded to a lane-dense 128-wide logits tile
        logits = jnp.dot(h.astype(jnp.bfloat16), wl2[...],
                         preferred_element_type=jnp.float32) + bl2[...]
        out_ref[0] = logits                                # (bt, 128)

    return kernel, (B, S, W, Wp, L, cmax)


# -----------------------------------------------------------------------------
# Forward wrapper (single pallas_call; only glue is embedding the input planes)
# -----------------------------------------------------------------------------
def bestnn_forward(x, kp, cfg, bt=None):
    c1, k1, c2, k2, pool1, c3, k3, c4, k4, pool2, lf = cfg
    n = x.shape[0]
    if bt is None:                  # keep the grid >= 2 so v7x can split it
        bt = 8 if n >= 16 else max(1, n // 2)
    kernel, (B, S, W, Wp, L, cmax) = _make_kernel(cfg, bt)

    g = pl.cdiv(n, bt)
    n_pad = g * bt

    # Embed each 28x28 image into its zero-bordered Wp-lane plane.  The /255
    # normalisation of the PyTorch module is folded into conv1's weight.
    img = x.astype(jnp.float32).reshape(n, IMG, IMG)
    plane = jnp.pad(img, ((0, n_pad - n), (B, B), (B, B))).reshape(n_pad, W)
    plane = jnp.pad(plane, ((0, 0), (0, Wp - W)))
    xin = plane.reshape(g, 1, L)

    masks = jnp.asarray(np.stack([
        np.tile(_grid_mask(B, S, W, Wp, 1), bt),
        np.tile(_grid_mask(B, S, W, Wp, pool1), bt),
        np.tile(_grid_mask(B, S, W, Wp, pool1 * pool2), bt),
    ]).reshape(3, 1, L))

    def full(a):
        nd = a.ndim
        return pl.BlockSpec(a.shape, lambda i, nd=nd: (0,) * nd)

    args = (xin, masks,
            kp["w1"], kp["b1"], kp["w2"], kp["b2"],
            kp["w3"], kp["b3"], kp["w4"], kp["b4"],
            kp["wl1e"], kp["bl1"], kp["wl2"], kp["bl2"])

    out = pl.pallas_call(
        kernel,
        out_shape=jax.ShapeDtypeStruct((g, bt, 128), jnp.float32),
        grid=(g,),
        in_specs=[pl.BlockSpec((1, 1, L), lambda i: (i, 0, 0))]
                 + [full(a) for a in args[1:]],
        out_specs=pl.BlockSpec((1, bt, 128), lambda i: (i, 0, 0)),
        scratch_shapes=[
            pltpu.VMEM((cmax, L), jnp.float32),        # ping
            pltpu.VMEM((cmax, L), jnp.float32),        # pong
            pltpu.VMEM((c4, bt, Wp), jnp.float32),     # fc layout (batch in M)
        ],
        compiler_params=pltpu.CompilerParams(
            dimension_semantics=("parallel",)),        # v7x: split groups over TCs
    )(*args)

    return out.reshape(n_pad, 128)[:n, :10]


# -----------------------------------------------------------------------------
# Parameters: PyTorch layout + one-time conversion to kernel layout
# -----------------------------------------------------------------------------
def init_params(key, cfg):
    """PyTorch-layout params with PyTorch-style uniform(-1/sqrt(fan_in)) init."""
    c1, k1, c2, k2, pool1, c3, k3, c4, k4, pool2, lf = cfg
    lin_in = c4 * (IMG // pool1 // pool2) ** 2
    keys = jax.random.split(key, 12)

    def u(k, shape, bound):
        return jax.random.uniform(k, shape, jnp.float32, -bound, bound)

    def conv(kw, kb, cin, cout, k):
        bound = 1.0 / float(np.sqrt(cin * k * k))
        return u(kw, (cout, cin, k, k), bound), u(kb, (cout,), bound)

    def lin(kw, kb, fin, fout):
        bound = 1.0 / float(np.sqrt(fin))
        return u(kw, (fout, fin), bound), u(kb, (fout,), bound)

    w1, b1 = conv(keys[0], keys[1], 1, c1, k1)
    w2, b2 = conv(keys[2], keys[3], c1, c2, k2)
    w3, b3 = conv(keys[4], keys[5], c2, c3, k3)
    w4, b4 = conv(keys[6], keys[7], c3, c4, k4)
    wl1, bl1 = lin(keys[8], keys[9], lin_in, lf)
    wl2, bl2 = lin(keys[10], keys[11], lf, 10)
    return dict(w1=w1, b1=b1, w2=w2, b2=b2, w3=w3, b3=b3, w4=w4, b4=b4,
                wl1=wl1, bl1=bl1, wl2=wl2, bl2=bl2)


def prepare_kernel_params(params, cfg):
    """One-time layout conversion (runs outside the hot path and outside jit)."""
    c1, k1, c2, k2, pool1, c3, k3, c4, k4, pool2, lf = cfg
    B, S, W, Wp, s1, s2 = _geometry(k1, k2, pool1, k3, k4, pool2)
    _roll_sign()                    # warm the probe cache outside any jit trace

    def conv_w(w, scale=1.0):
        # torch (cout, cin, k, k) -> (cout, k*k*cin), column order (dy, dx, cin)
        cout, cin, k, _ = w.shape
        w = jnp.transpose(w, (0, 2, 3, 1)).reshape(cout, k * k * cin)
        return (w * scale).astype(jnp.bfloat16)

    def conv_b(b):
        return b.reshape(-1, 1).astype(jnp.float32)

    # linear1 weight expanded onto the embedded stride-s2 plane, preserving
    # PyTorch's NCHW flatten order; non-grid plane positions get zero weight.
    ho = IMG // s2
    rows = B + s2 * np.arange(ho)
    pos = (rows[:, None] * S + rows[None, :]).reshape(-1)
    wl1 = jnp.transpose(params["wl1"]).reshape(c4, ho * ho, lf)
    wl1e = jnp.zeros((c4, Wp, lf), jnp.float32).at[:, pos, :].set(wl1)

    wl2 = jnp.zeros((lf, 128), jnp.float32).at[:, :10].set(
        jnp.transpose(params["wl2"]))
    bl2 = jnp.zeros((1, 128), jnp.float32).at[0, :10].set(params["bl2"])

    return dict(
        w1=conv_w(params["w1"], 1.0 / 255.0),      # fold x/255 into conv1
        b1=conv_b(params["b1"]),
        w2=conv_w(params["w2"]), b2=conv_b(params["b2"]),
        w3=conv_w(params["w3"]), b3=conv_b(params["b3"]),
        w4=conv_w(params["w4"]), b4=conv_b(params["b4"]),
        wl1e=wl1e.astype(jnp.bfloat16),
        bl1=params["bl1"].reshape(1, lf).astype(jnp.float32),
        wl2=wl2.astype(jnp.bfloat16),
        bl2=bl2,
    )


# -----------------------------------------------------------------------------
# Pure-JAX reference (mirrors the PyTorch module) for correctness checking
# -----------------------------------------------------------------------------
def reference_forward(x, params, cfg):
    c1, k1, c2, k2, pool1, c3, k3, c4, k4, pool2, lf = cfg
    n = x.shape[0]
    h = x.astype(jnp.float32).reshape(n, 1, IMG, IMG) / 255.0

    def conv(h, w, b):
        p = w.shape[-1] // 2
        y = lax.conv_general_dilated(
            h, w, window_strides=(1, 1), padding=[(p, p), (p, p)],
            dimension_numbers=("NCHW", "OIHW", "NCHW"))
        return jax.nn.relu(y + b[None, :, None, None])

    def pool(h, p):
        return lax.reduce_window(h, -jnp.inf, lax.max,
                                 (1, 1, p, p), (1, 1, p, p), "VALID")

    h = conv(h, params["w1"], params["b1"])
    h = conv(h, params["w2"], params["b2"])
    h = pool(h, pool1)
    h = conv(h, params["w3"], params["b3"])
    h = conv(h, params["w4"], params["b4"])
    h = pool(h, pool2)
    h = h.reshape(n, -1)
    h = h @ params["wl1"].T + params["bl1"]
    h = h @ params["wl2"].T + params["bl2"]
    return h


# -----------------------------------------------------------------------------
if __name__ == "__main__":
    # (n1_ch, n1_k, n2_ch, n2_k, pool1, n3_ch, n3_k, n4_ch, n4_k, pool2, lf)
    cfg = (4, 3, 8, 3, 2, 8, 3, 8, 3, 2, 32)

    key = jax.random.PRNGKey(0)
    kp_key, kx_key = jax.random.split(key)
    params = init_params(kp_key, cfg)
    kparams = prepare_kernel_params(params, cfg)

    fwd = jax.jit(functools.partial(bestnn_forward, cfg=cfg))

    # batch=2 exercises bt=1 / grid=2; batch=16 exercises the batched (bt=8)
    # path that carries the performance optimizations.
    for n in (2, 16):
        x = jax.random.uniform(jax.random.fold_in(kx_key, n), (n, 784),
                               jnp.float32, 0.0, 255.0)
        out = jax.block_until_ready(fwd(x, kparams))
        assert out.shape == (n, 10) and out.dtype == jnp.float32

        ref = jax.block_until_ready(reference_forward(x, params, cfg))
        err = float(jnp.max(jnp.abs(out - ref)))
        # bf16 MXU operands with f32 accumulation -> a few 1e-2 of logit scale.
        assert err < 5e-2, f"Pallas output mismatch vs reference at n={n}: {err}"

    print("KERNEL_OK")
</pallas_src>

<mosaic_0001>
module attributes {stable_mosaic.version = 11 : i64} {
  func.func @_roll_probe_kernel(%arg0: memref<8x128xi32, #tpu.memory_space<vmem>>, %arg1: memref<8x128xi32, #tpu.memory_space<vmem>>) attributes {dimension_semantics = [], scalar_prefetch = 0 : i64, scratch_operands = 0 : i64, tpu.core_type = #tpu.core_type<tc>} {
    %c0 = arith.constant 0 : index
    %c0_0 = arith.constant 0 : index
    %0 = vector.load %arg0[%c0, %c0_0] : memref<8x128xi32, #tpu.memory_space<vmem>>, vector<8x128xi32>
    %c1_i32 = arith.constant 1 : i32
    %1 = tpu.dynamic_rotate %0 by %c1_i32 dim 1 : vector<8x128xi32>, i32 -> vector<8x128xi32>
    %c0_1 = arith.constant 0 : index
    %c0_2 = arith.constant 0 : index
    %2 = vector.load %arg1[%c0_1, %c0_2] : memref<8x128xi32, #tpu.memory_space<vmem>>, vector<8x128xi32>
    tpu.vector_store %arg1[%c0_1, %c0_2], %1 {strides = array<i32>} : memref<8x128xi32, #tpu.memory_space<vmem>>, vector<8x128xi32>,
    return
  }
}

</mosaic_0001>

<llo_original>
// kernel: tpu_custom_call.1
$region0: #{tpu_custom_call.1}
  #allocation0 [shape = 'u32[]', space=smem, size = 0x4, offset = 0x4, fixed_abs, tag = 'smem constant byte address 0x4 - core index']
  #allocation1 [shape = 'u32[144,128]{1,0:T(1,128)}', space=vmem, size = 0x12000, scoped, tag = 'internal scratch']
  %s0 = inlined_call_operand.hbm [shape: s32[8,128], index: 0, kind: input, shape index: {}]
  %s1 = inlined_call_operand.hbm [shape: s32[8,128], index: 1, kind: output, shape index: {}]
  %s2 = sld [smem:[#allocation0]]
  $region18: #{tpu_custom_call.1} parent=0
    _
  %s4 = ssub.s32 1, %s2
  %s5 = scalar_select 0, %s4, %s2
  $region1: #{tpu_custom_call.1} parent=0
    #allocation2 [shape = 'u8[4096]{0}', space=vmem, size = 0x1000, scoped, tag = 'input window, operand 0, single buffered']
    #allocation3 [shape = 's32[1]{0}', space=sflag, size = 0x4, scoped, tag = 'scoped memory for tpu_custom_call.1']
    #allocation4 [shape = 's32[1]{0}', space=sflag, size = 0x4, scoped, tag = 'scoped memory for tpu_custom_call.1']
    #allocation5 [shape = 'u8[4096]{0}', space=vmem, size = 0x1000, scoped, tag = 'output window, operand 0, single buffered']
    %6 = vsyncpa [#allocation3], 0
    %7 = vsyncpa [#allocation4], 0
    // Predicated region
    $region2: #{tpu_custom_call.1} parent=1 // pred_check
      _
    $region3: #{tpu_custom_call.1} parent=1 // pred_check_branch
      %9 = sbr.rel (0) target = $region5
    $region4: #{tpu_custom_call.1} parent=1 // pred_region
      %s11 = ssub.s32 128, 128
      %12 = vsyncadd [#allocation3], %s11
      %s14 = sshll.u32 [#allocation2], 4
      %s15 = int_to_ptr.vmem [resolvable:$true] %s14
      %17 = dma.hbm_to_vmem [thread:$0]  %s0, 128, %s15, [#allocation3]
    $region5: #{tpu_custom_call.1} parent=1 // pred_fallthru
      _
    // Predicated region
    $region6: #{tpu_custom_call.1} parent=1 // pred_check
      _
    $region7: #{tpu_custom_call.1} parent=1 // pred_check_branch
      %19 = sbr.rel (0) target = $region9
    $region8: #{tpu_custom_call.1} parent=1 // pred_region
      %20 = dma.done [#allocation3], 128
    $region9: #{tpu_custom_call.1} parent=1 // pred_fallthru
      _
    %v21 = vld [vmem:[#allocation2] sm:$0xff]
    %22 = vrot.lane.b32.xlu0 %v21, 1
    %v23 = vpop.permute.xlu0 %22
    %24 = vst [vmem:[#allocation5] sm:$0xff] %v23
    // Predicated region
    $region10: #{tpu_custom_call.1} parent=1 // pred_check
      _
    $region11: #{tpu_custom_call.1} parent=1 // pred_check_branch
      %26 = sbr.rel (0) target = $region13
    $region12: #{tpu_custom_call.1} parent=1 // pred_region
      %s28 = ssub.s32 128, 128
      %29 = vsyncadd [#allocation4], %s28
      %s31 = sshll.u32 [#allocation5], 4
      %s32 = int_to_ptr.vmem [resolvable:$true] %s31
      %34 = dma.vmem_to_hbm [thread:$0]  %s32, 128, %s1, [#allocation4]
    $region13: #{tpu_custom_call.1} parent=1 // pred_fallthru
      _
    // Predicated region
    $region14: #{tpu_custom_call.1} parent=1 // pred_check
      _
    $region15: #{tpu_custom_call.1} parent=1 // pred_check_branch
      %36 = sbr.rel (0) target = $region17
    $region16: #{tpu_custom_call.1} parent=1 // pred_region
      %37 = dma.done [#allocation4], 128
    $region17: #{tpu_custom_call.1} parent=1 // pred_fallthru
      _
    %38 = vsyncpa [#allocation3], 1
    %39 = vsyncpa [#allocation4], 1

</llo_original>
